<compile_context>
chip_gen: v7x
topology: tpu7x:2x2x1
jax: 0.10.0
libtpu: 0.0.40
codegen_flags: <defaults>
</compile_context>

<pallas_src>
import numpy as np
import jax
import jax.numpy as jnp
from jax.experimental import pallas as pl
from jax.experimental.pallas import tpu as pltpu

# ----------------------------- hyperparameters ------------------------------
CLASS_NUM = 8        # pp.class_num
CAT_NUM = 6          # pp.categorical_num
NUM_NUM = 5          # pp.numerical_num
WINDOW_SIZE = 32
EMBEDDING_SIZE = 8
HIDDEN_SIZE = 16
SEQ_LENGTH = WINDOW_SIZE * EMBEDDING_SIZE   # 256
BATCH = 2


def _layer_setup():
    """Reproduce the numpy layer-size computation from AE.__init__."""
    dec_steps = 3 ** np.arange(max(np.ceil(np.log2(HIDDEN_SIZE)), 2),
                               np.log2(SEQ_LENGTH))[1:-2]
    dec_setup = np.concatenate([[HIDDEN_SIZE], dec_steps.repeat(2), [SEQ_LENGTH]])
    enc_setup = dec_setup[::-1]
    enc_pairs = [(int(a), int(b)) for a, b in enc_setup.reshape(-1, 2)]
    dec_pairs = [(int(a), int(b)) for a, b in dec_setup.reshape(-1, 2)]
    return enc_pairs, dec_pairs


ENC_PAIRS, DEC_PAIRS = _layer_setup()   # [(256,243),(243,16)] / [(16,243),(243,256)]
N_ENC, N_DEC = len(ENC_PAIRS), len(DEC_PAIRS)


def _round_up(x, m):
    return ((x + m - 1) // m) * m


def _padded_pairs():
    """Zero-pad interior layer widths (>=128) up to multiples of 128.

    The first encoder input dim and last decoder output dim equal W*E and are
    left untouched so kernel I/O shapes stay exactly the model's shapes.
    """
    chain = [ENC_PAIRS[0][0]] + [b for _, b in ENC_PAIRS] + [b for _, b in DEC_PAIRS]
    pad = lambda d: int(_round_up(d, 128)) if d >= 128 else d
    pchain = [chain[0]] + [pad(d) for d in chain[1:-1]] + [chain[-1]]
    enc_p = [(pchain[i], pchain[i + 1]) for i in range(N_ENC)]
    dec_p = [(pchain[N_ENC + i], pchain[N_ENC + i + 1]) for i in range(N_DEC)]
    return enc_p, dec_p


PADDED_ENC, PADDED_DEC = _padded_pairs()   # [(256,256),(256,16)] / [(16,256),(256,256)]


# ------------------------------- Pallas kernel -------------------------------
def make_fused_kernel(n_enc, n_dec):
    """Fused embedding + encoder + decoder.

    refs layout: evcat, vn, w_lin_blk, w_num_blk, (w,b)*enc, (w,b)*dec,
                 recon_out, x_out
    No tanh after the last Linear of each stack (matches the PyTorch
    `flatten()[:-1]` trick).
    """
    def kernel(*refs):
        evcat_ref, vn_ref, w_lin_ref, w_num_ref = refs[:4]
        layer_refs = refs[4:4 + 2 * (n_enc + n_dec)]
        recon_ref, x_ref = refs[-2:]

        # Embedding, computed directly in the flattened (B, W*E) layout via
        # block-diagonal weights -> lane-dense, no in-kernel reshape.
        # (2x scaling of w_cat is folded into w_lin_blk at pack time.)
        h = (
            jnp.dot(evcat_ref[...], w_lin_ref[...],
                    preferred_element_type=jnp.float32)
            + 2.0 * jnp.tanh(
                jnp.dot(vn_ref[...], w_num_ref[...],
                        preferred_element_type=jnp.float32))
        )
        x_ref[...] = h          # flattened embedding (== x.view(B, -1))

        idx = 0
        for i in range(n_enc):
            w, b = layer_refs[idx], layer_refs[idx + 1]
            idx += 2
            h = jnp.dot(h, w[...], preferred_element_type=jnp.float32) + b[...]
            if i < n_enc - 1:
                h = jnp.tanh(h)
        for i in range(n_dec):
            w, b = layer_refs[idx], layer_refs[idx + 1]
            idx += 2
            h = jnp.dot(h, w[...], preferred_element_type=jnp.float32) + b[...]
            if i < n_dec - 1:
                h = jnp.tanh(h)
        recon_ref[...] = h
    return kernel


# ------------------------------ param packing --------------------------------
def pack_params(params):
    """Fold/pad parameters for the fused kernel (done once, outside the kernel)."""
    W, E = WINDOW_SIZE, EMBEDDING_SIZE
    # concat [w_class ; 2*w_cat] -> (14, 8); scaling by 2 is exact in f32
    w_lin = jnp.concatenate([params["w_class"], 2.0 * params["w_cat"]], axis=0)
    eye = jnp.eye(W, dtype=jnp.float32)
    w_lin_blk = jnp.kron(eye, w_lin)            # (W*14, W*E) block-diagonal
    w_num_blk = jnp.kron(eye, params["w_num"])  # (W*5,  W*E) block-diagonal

    layers = []
    for (w, b), (pi, po) in zip(params["enc"] + params["dec"],
                                PADDED_ENC + PADDED_DEC):
        fi, fo = w.shape
        w_pad = jnp.zeros((pi, po), jnp.float32).at[:fi, :fo].set(w)
        b_pad = jnp.zeros((1, po), jnp.float32).at[:, :fo].set(b)
        layers.append((w_pad, b_pad))

    return {"w_lin_blk": w_lin_blk, "w_num_blk": w_num_blk, "layers": layers}


# ------------------------------- wrapper -------------------------------------
def ae_forward(event, vc, vn, packed):
    """Pallas implementation of AE.forward. Returns (reconstructed_x, x)."""
    B, W, _ = event.shape
    E = EMBEDDING_SIZE

    # (B, W, 14) -> (B, W*14) and (B, W, 5) -> (B, W*5); contiguous reshapes.
    evcat = jnp.concatenate([event, vc], axis=-1).reshape(B, W * (CLASS_NUM + CAT_NUM))
    vn_flat = vn.reshape(B, W * NUM_NUM)

    vmem = pl.BlockSpec(memory_space=pltpu.MemorySpace.VMEM)

    args = [evcat, vn_flat, packed["w_lin_blk"], packed["w_num_blk"]]
    for w, b in packed["layers"]:
        args += [w, b]

    # advisory cost hint for XLA's scheduler
    flops = 2 * B * (evcat.shape[1] + vn_flat.shape[1]) * (W * E)
    tanh_count = B * W * E
    for i, (w, _) in enumerate(packed["layers"]):
        flops += 2 * B * w.shape[0] * w.shape[1]
        is_last_enc = (i == N_ENC - 1)
        is_last_dec = (i == N_ENC + N_DEC - 1)
        if not (is_last_enc or is_last_dec):
            tanh_count += B * w.shape[1]
    bytes_accessed = 4 * (sum(int(np.prod(a.shape)) for a in args) + 2 * B * W * E)
    ce = pl.CostEstimate(flops=int(flops), transcendentals=int(tanh_count),
                         bytes_accessed=int(bytes_accessed))

    recon_flat, x_flat = pl.pallas_call(
        make_fused_kernel(N_ENC, N_DEC),
        out_shape=(jax.ShapeDtypeStruct((B, W * E), jnp.float32),   # reconstructed
                   jax.ShapeDtypeStruct((B, W * E), jnp.float32)),  # embedding x
        in_specs=[vmem] * len(args),
        out_specs=(vmem, vmem),
        cost_estimate=ce,
    )(*args)

    # PyTorch: x = emb.reshape(B, E, W); dec.view(x.shape) — contiguous reshapes,
    # not transposes, reproduced here outside the kernel.
    reconstructed_x = recon_flat.reshape(B, E, W)
    x = x_flat.reshape(B, E, W)
    return reconstructed_x, x


# -------------------------- deterministic params ------------------------------
def init_params(key):
    def linear(k, fan_in, fan_out, bias):
        k1, k2 = jax.random.split(k)
        bound = 1.0 / np.sqrt(fan_in)
        w = jax.random.uniform(k1, (fan_in, fan_out), jnp.float32, -bound, bound)
        if not bias:
            return w
        b = jax.random.uniform(k2, (1, fan_out), jnp.float32, -bound, bound)
        return w, b

    keys = jax.random.split(key, 3 + N_ENC + N_DEC)
    params = {
        "w_class": linear(keys[0], CLASS_NUM, EMBEDDING_SIZE, bias=False),
        "w_cat": linear(keys[1], CAT_NUM, EMBEDDING_SIZE, bias=False),
        "w_num": linear(keys[2], NUM_NUM, EMBEDDING_SIZE, bias=False),
        "enc": [],
        "dec": [],
    }
    ki = 3
    for (a, b) in ENC_PAIRS:
        params["enc"].append(linear(keys[ki], a, b, bias=True))
        ki += 1
    for (a, b) in DEC_PAIRS:
        params["dec"].append(linear(keys[ki], a, b, bias=True))
        ki += 1
    return params


# ------------------------------ pure-JAX reference ----------------------------
def ae_reference(event, vc, vn, params):
    emb = (event @ params["w_class"]
           + 2.0 * (vc @ params["w_cat"] + jnp.tanh(vn @ params["w_num"])))  # (B,W,E)
    B, W, E = emb.shape
    x = emb.reshape(B, E, W)
    h = emb.reshape(B, W * E)
    for i, (w, b) in enumerate(params["enc"]):
        h = h @ w + b
        if i < len(params["enc"]) - 1:
            h = jnp.tanh(h)
    for i, (w, b) in enumerate(params["dec"]):
        h = h @ w + b
        if i < len(params["dec"]) - 1:
            h = jnp.tanh(h)
    return h.reshape(B, E, W), x


# ----------------------------------- main -------------------------------------
if __name__ == "__main__":
    key = jax.random.PRNGKey(0)
    k_ev, k_vc, k_vn, k_par = jax.random.split(key, 4)

    event = jax.random.normal(k_ev, (BATCH, WINDOW_SIZE, CLASS_NUM), jnp.float32)
    vc = jax.random.normal(k_vc, (BATCH, WINDOW_SIZE, CAT_NUM), jnp.float32)
    vn = jax.random.normal(k_vn, (BATCH, WINDOW_SIZE, NUM_NUM), jnp.float32)
    params = init_params(k_par)
    packed = pack_params(params)

    fwd = jax.jit(ae_forward)
    recon, x = fwd(event, vc, vn, packed)
    recon = jax.block_until_ready(recon)
    x = jax.block_until_ready(x)

    recon_ref, x_ref = ae_reference(event, vc, vn, params)
    np.testing.assert_allclose(np.asarray(x), np.asarray(x_ref), rtol=2e-5, atol=1e-5)
    np.testing.assert_allclose(np.asarray(recon), np.asarray(recon_ref),
                               rtol=2e-5, atol=2e-5)

    assert recon.shape == (BATCH, EMBEDDING_SIZE, WINDOW_SIZE)
    assert x.shape == (BATCH, EMBEDDING_SIZE, WINDOW_SIZE)

    print("KERNEL_OK")
</pallas_src>

<mosaic_0001>
module attributes {stable_mosaic.version = 11 : i64} {
  func.func @kernel(%arg0: memref<2x448xf32, #tpu.memory_space<vmem>>, %arg1: memref<2x160xf32, #tpu.memory_space<vmem>>, %arg2: memref<448x256xf32, #tpu.memory_space<vmem>>, %arg3: memref<160x256xf32, #tpu.memory_space<vmem>>, %arg4: memref<256x256xf32, #tpu.memory_space<vmem>>, %arg5: memref<1x256xf32, #tpu.memory_space<vmem>>, %arg6: memref<256x16xf32, #tpu.memory_space<vmem>>, %arg7: memref<1x16xf32, #tpu.memory_space<vmem>>, %arg8: memref<16x256xf32, #tpu.memory_space<vmem>>, %arg9: memref<1x256xf32, #tpu.memory_space<vmem>>, %arg10: memref<256x256xf32, #tpu.memory_space<vmem>>, %arg11: memref<1x256xf32, #tpu.memory_space<vmem>>, %arg12: memref<2x256xf32, #tpu.memory_space<vmem>>, %arg13: memref<2x256xf32, #tpu.memory_space<vmem>>) attributes {dimension_semantics = [], scalar_prefetch = 0 : i64, scratch_operands = 0 : i64, tpu.core_type = #tpu.core_type<tc>} {
    %c0 = arith.constant 0 : index
    %c0_0 = arith.constant 0 : index
    %0 = vector.load %arg0[%c0, %c0_0] : memref<2x448xf32, #tpu.memory_space<vmem>>, vector<2x448xf32>
    %c0_1 = arith.constant 0 : index
    %c0_2 = arith.constant 0 : index
    %1 = vector.load %arg2[%c0_1, %c0_2] : memref<448x256xf32, #tpu.memory_space<vmem>>, vector<448x256xf32>
    %cst = arith.constant dense<0.000000e+00> : vector<2x256xf32>
    %2 = tpu.matmul %0, %1, %cst {dimension_numbers = #tpu.dot_dimension_numbers<[1], [0], [0], [1], [0, 0, 1, 1], [], []>} : vector<2x448xf32>, vector<448x256xf32>, vector<2x256xf32> -> vector<2x256xf32>
    %c0_3 = arith.constant 0 : index
    %c0_4 = arith.constant 0 : index
    %3 = vector.load %arg1[%c0_3, %c0_4] : memref<2x160xf32, #tpu.memory_space<vmem>>, vector<2x160xf32>
    %c0_5 = arith.constant 0 : index
    %c0_6 = arith.constant 0 : index
    %4 = vector.load %arg3[%c0_5, %c0_6] : memref<160x256xf32, #tpu.memory_space<vmem>>, vector<160x256xf32>
    %cst_7 = arith.constant dense<0.000000e+00> : vector<2x256xf32>
    %5 = tpu.matmul %3, %4, %cst_7 {dimension_numbers = #tpu.dot_dimension_numbers<[1], [0], [0], [1], [0, 0, 1, 1], [], []>} : vector<2x160xf32>, vector<160x256xf32>, vector<2x256xf32> -> vector<2x256xf32>
    %6 = math.tanh %5 : vector<2x256xf32>
    %cst_8 = arith.constant 2.000000e+00 : f32
    %7 = vector.broadcast %cst_8 : f32 to vector<2x256xf32>
    %8 = arith.mulf %7, %6 : vector<2x256xf32>
    %9 = arith.addf %2, %8 : vector<2x256xf32>
    %c0_9 = arith.constant 0 : index
    %c0_10 = arith.constant 0 : index
    %10 = vector.load %arg13[%c0_9, %c0_10] : memref<2x256xf32, #tpu.memory_space<vmem>>, vector<2x256xf32>
    tpu.vector_store %arg13[%c0_9, %c0_10], %9 {strides = array<i32>} : memref<2x256xf32, #tpu.memory_space<vmem>>, vector<2x256xf32>,
    %c0_11 = arith.constant 0 : index
    %c0_12 = arith.constant 0 : index
    %11 = vector.load %arg4[%c0_11, %c0_12] : memref<256x256xf32, #tpu.memory_space<vmem>>, vector<256x256xf32>
    %cst_13 = arith.constant dense<0.000000e+00> : vector<2x256xf32>
    %12 = tpu.matmul %9, %11, %cst_13 {dimension_numbers = #tpu.dot_dimension_numbers<[1], [0], [0], [1], [0, 0, 1, 1], [], []>} : vector<2x256xf32>, vector<256x256xf32>, vector<2x256xf32> -> vector<2x256xf32>
    %c0_14 = arith.constant 0 : index
    %c0_15 = arith.constant 0 : index
    %13 = vector.load %arg5[%c0_14, %c0_15] : memref<1x256xf32, #tpu.memory_space<vmem>>, vector<1x256xf32>
    %14 = vector.broadcast %13 : vector<1x256xf32> to vector<2x256xf32>
    %15 = arith.addf %12, %14 : vector<2x256xf32>
    %16 = math.tanh %15 : vector<2x256xf32>
    %c0_16 = arith.constant 0 : index
    %c0_17 = arith.constant 0 : index
    %17 = vector.load %arg6[%c0_16, %c0_17] : memref<256x16xf32, #tpu.memory_space<vmem>>, vector<256x16xf32>
    %cst_18 = arith.constant dense<0.000000e+00> : vector<2x16xf32>
    %18 = tpu.matmul %16, %17, %cst_18 {dimension_numbers = #tpu.dot_dimension_numbers<[1], [0], [0], [1], [0, 0, 1, 1], [], []>} : vector<2x256xf32>, vector<256x16xf32>, vector<2x16xf32> -> vector<2x16xf32>
    %c0_19 = arith.constant 0 : index
    %c0_20 = arith.constant 0 : index
    %19 = vector.load %arg7[%c0_19, %c0_20] : memref<1x16xf32, #tpu.memory_space<vmem>>, vector<1x16xf32>
    %20 = vector.broadcast %19 : vector<1x16xf32> to vector<2x16xf32>
    %21 = arith.addf %18, %20 : vector<2x16xf32>
    %c0_21 = arith.constant 0 : index
    %c0_22 = arith.constant 0 : index
    %22 = vector.load %arg8[%c0_21, %c0_22] : memref<16x256xf32, #tpu.memory_space<vmem>>, vector<16x256xf32>
    %cst_23 = arith.constant dense<0.000000e+00> : vector<2x256xf32>
    %23 = tpu.matmul %21, %22, %cst_23 {dimension_numbers = #tpu.dot_dimension_numbers<[1], [0], [0], [1], [0, 0, 1, 1], [], []>} : vector<2x16xf32>, vector<16x256xf32>, vector<2x256xf32> -> vector<2x256xf32>
    %c0_24 = arith.constant 0 : index
    %c0_25 = arith.constant 0 : index
    %24 = vector.load %arg9[%c0_24, %c0_25] : memref<1x256xf32, #tpu.memory_space<vmem>>, vector<1x256xf32>
    %25 = vector.broadcast %24 : vector<1x256xf32> to vector<2x256xf32>
    %26 = arith.addf %23, %25 : vector<2x256xf32>
    %27 = math.tanh %26 : vector<2x256xf32>
    %c0_26 = arith.constant 0 : index
    %c0_27 = arith.constant 0 : index
    %28 = vector.load %arg10[%c0_26, %c0_27] : memref<256x256xf32, #tpu.memory_space<vmem>>, vector<256x256xf32>
    %cst_28 = arith.constant dense<0.000000e+00> : vector<2x256xf32>
    %29 = tpu.matmul %27, %28, %cst_28 {dimension_numbers = #tpu.dot_dimension_numbers<[1], [0], [0], [1], [0, 0, 1, 1], [], []>} : vector<2x256xf32>, vector<256x256xf32>, vector<2x256xf32> -> vector<2x256xf32>
    %c0_29 = arith.constant 0 : index
    %c0_30 = arith.constant 0 : index
    %30 = vector.load %arg11[%c0_29, %c0_30] : memref<1x256xf32, #tpu.memory_space<vmem>>, vector<1x256xf32>
    %31 = vector.broadcast %30 : vector<1x256xf32> to vector<2x256xf32>
    %32 = arith.addf %29, %31 : vector<2x256xf32>
    %c0_31 = arith.constant 0 : index
    %c0_32 = arith.constant 0 : index
    %33 = vector.load %arg12[%c0_31, %c0_32] : memref<2x256xf32, #tpu.memory_space<vmem>>, vector<2x256xf32>
    tpu.vector_store %arg12[%c0_31, %c0_32], %32 {strides = array<i32>} : memref<2x256xf32, #tpu.memory_space<vmem>>, vector<2x256xf32>,
    return
  }
}

</mosaic_0001>

<llo_original>
// kernel: ae_forward.1
$region0: #{ae_forward.1}
  #allocation0 [shape = 'u32[]', space=smem, size = 0x4, offset = 0x4, fixed_abs, tag = 'smem constant byte address 0x4 - core index']
  #allocation1 [shape = 'u32[144,128]{1,0:T(1,128)}', space=vmem, size = 0x12000, scoped, tag = 'internal scratch']
  %s0 = inlined_call_operand.vmem [shape: f32[2,448], index: 0, kind: input, shape index: {}]
  %s1 = inlined_call_operand.vmem [shape: f32[2,160], index: 1, kind: input, shape index: {}]
  %s2 = inlined_call_operand.hbm [shape: f32[448,256], index: 2, kind: input, shape index: {}]
  %s3 = inlined_call_operand.hbm [shape: f32[160,256], index: 3, kind: input, shape index: {}]
  %s4 = inlined_call_operand.vmem [shape: f32[256,256], index: 4, kind: input, shape index: {}]
  %s5 = inlined_call_operand.vmem [shape: f32[1,256], index: 5, kind: input, shape index: {}]
  %s6 = inlined_call_operand.vmem [shape: f32[256,16], index: 6, kind: input, shape index: {}]
  %s7 = inlined_call_operand.vmem [shape: f32[1,16], index: 7, kind: input, shape index: {}]
  %s8 = inlined_call_operand.vmem [shape: f32[16,256], index: 8, kind: input, shape index: {}]
  %s9 = inlined_call_operand.vmem [shape: f32[1,256], index: 9, kind: input, shape index: {}]
  %s10 = inlined_call_operand.hbm [shape: f32[256,256], index: 10, kind: input, shape index: {}]
  %s11 = inlined_call_operand.vmem [shape: f32[1,256], index: 11, kind: input, shape index: {}]
  %s12 = inlined_call_operand.vmem [shape: f32[2,256], index: 12, kind: output, shape index: {0}]
  %s13 = inlined_call_operand.vmem [shape: f32[2,256], index: 13, kind: output, shape index: {1}]
  %14 = xla_tuple %s12, %s13
  %s15 = sld [smem:[#allocation0]]
  $region78: #{ae_forward.1} parent=0
    _
  %s17 = ssub.s32 1, %s15
  %s18 = scalar_select 0, %s17, %s15
  $region1: #{ae_forward.1} parent=0
    #allocation2 [shape = 'u8[458752]{0}', space=vmem, size = 0x70000, scoped, tag = 'input window, operand 2, single buffered']
    #allocation3 [shape = 's32[1]{0}', space=sflag, size = 0x4, scoped, tag = 'scoped memory for ae_forward.1']
    #allocation4 [shape = 'u8[163840]{0}', space=vmem, size = 0x28000, scoped, tag = 'input window, operand 3, single buffered']
    #allocation5 [shape = 's32[1]{0}', space=sflag, size = 0x4, scoped, tag = 'scoped memory for ae_forward.1']
    #allocation6 [shape = 'u8[262144]{0}', space=vmem, size = 0x40000, scoped, tag = 'input window, operand 10, single buffered']
    %19 = vsyncpa [#allocation3], 0
    %20 = vsyncpa [#allocation5], 0
    // Predicated region
    $region2: #{ae_forward.1} parent=1 // pred_check
      _
    $region3: #{ae_forward.1} parent=1 // pred_check_branch
      %22 = sbr.rel (0) target = $region5
    $region4: #{ae_forward.1} parent=1 // pred_region
      _
    $region5: #{ae_forward.1} parent=1 // pred_fallthru
      _
    // Predicated region
    $region6: #{ae_forward.1} parent=1 // pred_check
      _
    $region7: #{ae_forward.1} parent=1 // pred_check_branch
      %24 = sbr.rel (0) target = $region9
    $region8: #{ae_forward.1} parent=1 // pred_region
      _
    $region9: #{ae_forward.1} parent=1 // pred_fallthru
      _
    // Predicated region
    $region10: #{ae_forward.1} parent=1 // pred_check
      _
    $region11: #{ae_forward.1} parent=1 // pred_check_branch
      %26 = sbr.rel (0) target = $region13
    $region12: #{ae_forward.1} parent=1 // pred_region
      %s28 = ssub.s32 14336, 14336
      %29 = vsyncadd [#allocation3], %s28
      %s30 = sshll.u32 [#allocation2], 4
      %s31 = int_to_ptr.vmem [resolvable:$true] %s30
      %36 = dma.hbm_to_vmem [thread:$0]  %s2, 14336, %s31, [#allocation3], 256, 256, 16
    $region13: #{ae_forward.1} parent=1 // pred_fallthru
      _
    // Predicated region
    $region14: #{ae_forward.1} parent=1 // pred_check
      _
    $region15: #{ae_forward.1} parent=1 // pred_check_branch
      %38 = sbr.rel (0) target = $region17
    $region16: #{ae_forward.1} parent=1 // pred_region
      %s40 = ssub.s32 5120, 5120
      %41 = vsyncadd [#allocation5], %s40
      %s42 = sshll.u32 [#allocation4], 4
      %s43 = int_to_ptr.vmem [resolvable:$true] %s42
      %48 = dma.hbm_to_vmem [thread:$0]  %s3, 5120, %s43, [#allocation5], 256, 256, 16
    $region17: #{ae_forward.1} parent=1 // pred_fallthru
      _
    // Predicated region
    $region18: #{ae_forward.1} parent=1 // pred_check
      _
    $region19: #{ae_forward.1} parent=1 // pred_check_branch
      %50 = sbr.rel (0) target = $region21
    $region20: #{ae_forward.1} parent=1 // pred_region
      _
    $region21: #{ae_forward.1} parent=1 // pred_fallthru
      _
    // Predicated region
    $region22: #{ae_forward.1} parent=1 // pred_check
      _
    $region23: #{ae_forward.1} parent=1 // pred_check_branch
      %52 = sbr.rel (0) target = $region25
    $region24: #{ae_forward.1} parent=1 // pred_region
      _
    $region25: #{ae_forward.1} parent=1 // pred_fallthru
      _
    // Predicated region
    $region26: #{ae_forward.1} parent=1 // pred_check
      _
    $region27: #{ae_forward.1} parent=1 // pred_check_branch
      %54 = sbr.rel (0) target = $region29
    $region28: #{ae_forward.1} parent=1 // pred_region
      _
    $region29: #{ae_forward.1} parent=1 // pred_fallthru
      _
    // Predicated region
    $region30: #{ae_forward.1} parent=1 // pred_check
      _
    $region31: #{ae_forward.1} parent=1 // pred_check_branch
      %56 = sbr.rel (0) target = $region33
    $region32: #{ae_forward.1} parent=1 // pred_region
      _
    $region33: #{ae_forward.1} parent=1 // pred_fallthru
      _
    // Predicated region
    $region34: #{ae_forward.1} parent=1 // pred_check
      _
    $region35: #{ae_forward.1} parent=1 // pred_check_branch
      %58 = sbr.rel (0) target = $region37
    $region36: #{ae_forward.1} parent=1 // pred_region
      _
    $region37: #{ae_forward.1} parent=1 // pred_fallthru
      _
    // Predicated region
    $region38: #{ae_forward.1} parent=1 // pred_check
      _
    $region39: #{ae_forward.1} parent=1 // pred_check_branch
      %60 = sbr.rel (0) target = $region41
    $region40: #{ae_forward.1} parent=1 // pred_region
      _
    $region41: #{ae_forward.1} parent=1 // pred_fallthru
      _
    // Predicated region
    $region42: #{ae_forward.1} parent=1 // pred_check
      _
    $region43: #{ae_forward.1} parent=1 // pred_check_branch
      %62 = sbr.rel (0) target = $region45
    $region44: #{ae_forward.1} parent=1 // pred_region
      %s64 = ssub.s32 8192, 8192
      %65 = vsyncadd [#allocation5], %s64
      %s66 = sshll.u32 [#allocation6], 4
      %s67 = int_to_ptr.vmem [resolvable:$true] %s66
      %72 = dma.hbm_to_vmem [thread:$0]  %s10, 8192, %s67, [#allocation5], 256, 256, 16
    $region45: #{ae_forward.1} parent=1 // pred_fallthru
      _
    // Predicated region
    $region46: #{ae_forward.1} parent=1 // pred_check
      _
    $region47: #{ae_forward.1} parent=1 // pred_check_branch
      %74 = sbr.rel (0) target = $region49
    $region48: #{ae_forward.1} parent=1 // pred_region
      _
    $region49: #{ae_forward.1} parent=1 // pred_fallthru
      _
    // Predicated region
    $region50: #{ae_forward.1} parent=1 // pred_check
      _
    $region51: #{ae_forward.1} parent=1 // pred_check_branch
      %76 = sbr.rel (0) target = $region53
    $region52: #{ae_forward.1} parent=1 // pred_region
      %77 = dma.done [#allocation3], 14336
    $region53: #{ae_forward.1} parent=1 // pred_fallthru
      _
    // Predicated region
    $region54: #{ae_forward.1} parent=1 // pred_check
      _
    $region55: #{ae_forward.1} parent=1 // pred_check_branch
      %79 = sbr.rel (0) target = $region57
    $region56: #{ae_forward.1} parent=1 // pred_region
      %80 = dma.done [#allocation5], 5120
    $region57: #{ae_forward.1} parent=1 // pred_fallthru
      _
    // Predicated region
    $region58: #{ae_forward.1} parent=1 // pred_check
      _
    $region59: #{ae_forward.1} parent=1 // pred_check_branch
      %82 = sbr.rel (0) target = $region61
    $region60: #{ae_forward.1} parent=1 // pred_region
      %83 = dma.done [#allocation5], 8192
    $region61: #{ae_forward.1} parent=1 // pred_fallthru
      _
    %v84 = vld [vmem:[%s0] sm:$0xff]
    %v85 = vld [vmem:[#allocation2] sm:$0xff]
    %v86 = vld [vmem:[#allocation2 + $0x8] sm:$0xff]
    %v87 = vld [vmem:[#allocation2 + $0x10] sm:$0xff]
    %v88 = vld [vmem:[#allocation2 + $0x18] sm:$0xff]
    %v89 = vld [vmem:[#allocation2 + $0x20] sm:$0xff]
    %v90 = vld [vmem:[#allocation2 + $0x28] sm:$0xff]
    %v91 = vld [vmem:[#allocation2 + $0x30] sm:$0xff]
    %v92 = vld [vmem:[#allocation2 + $0x38] sm:$0xff]
    %v93 = vld [vmem:[#allocation2 + $0x40] sm:$0xff]
    %v94 = vld [vmem:[#allocation2 + $0x48] sm:$0xff]
    %v95 = vld [vmem:[#allocation2 + $0x50] sm:$0xff]
    %v96 = vld [vmem:[#allocation2 + $0x58] sm:$0xff]
    %v97 = vld [vmem:[#allocation2 + $0x60] sm:$0xff]
    %v98 = vld [vmem:[#allocation2 + $0x68] sm:$0xff]
    %v99 = vld [vmem:[#allocation2 + $0x70] sm:$0xff]
    %v100 = vld [vmem:[#allocation2 + $0x78] sm:$0xff]
    %v101 = vld [vmem:[#allocation2 + $0x80] sm:$0xff]
    %v102 = vld [vmem:[#allocation2 + $0x88] sm:$0xff]
    %v103 = vld [vmem:[#allocation2 + $0x90] sm:$0xff]
    %v104 = vld [vmem:[#allocation2 + $0x98] sm:$0xff]
    %v105 = vld [vmem:[#allocation2 + $0xa0] sm:$0xff]
    %v106 = vld [vmem:[#allocation2 + $0xa8] sm:$0xff]
    %v107 = vld [vmem:[#allocation2 + $0xb0] sm:$0xff]
    %v108 = vld [vmem:[#allocation2 + $0xb8] sm:$0xff]
    %v109 = vld [vmem:[#allocation2 + $0xc0] sm:$0xff]
    %v110 = vld [vmem:[#allocation2 + $0xc8] sm:$0xff]
    %v111 = vld [vmem:[#allocation2 + $0xd0] sm:$0xff]
    %v112 = vld [vmem:[#allocation2 + $0xd8] sm:$0xff]
    %v113 = vld [vmem:[#allocation2 + $0xe0] sm:$0xff]
    %v114 = vld [vmem:[#allocation2 + $0xe8] sm:$0xff]
    %v115 = vld [vmem:[#allocation2 + $0xf0] sm:$0xff]
    %v116 = vld [vmem:[#allocation2 + $0xf8] sm:$0xff]
    %v117 = vld [vmem:[#allocation2 + $0x100] sm:$0xff]
    %v118 = vld [vmem:[#allocation2 + $0x108] sm:$0xff]
    %v119 = vld [vmem:[#allocation2 + $0x110] sm:$0xff]
    %v120 = vld [vmem:[#allocation2 + $0x118] sm:$0xff]
    %v121 = vld [vmem:[#allocation2 + $0x120] sm:$0xff]
    %v122 = vld [vmem:[#allocation2 + $0x128] sm:$0xff]
    %v123 = vld [vmem:[#allocation2 + $0x130] sm:$0xff]
    %v124 = vld [vmem:[#allocation2 + $0x138] sm:$0xff]
    %v125 = vld [vmem:[#allocation2 + $0x140] sm:$0xff]
    %v126 = vld [vmem:[#allocation2 + $0x148] sm:$0xff]
    %v127 = vld [vmem:[#allocation2 + $0x150] sm:$0xff]
    %v128 = vld [vmem:[#allocation2 + $0x158] sm:$0xff]
    %v129 = vld [vmem:[#allocation2 + $0x160] sm:$0xff]
    %v130 = vld [vmem:[#allocation2 + $0x168] sm:$0xff]
    %v131 = vld [vmem:[#allocation2 + $0x170] sm:$0xff]
    %v132 = vld [vmem:[#allocation2 + $0x178] sm:$0xff]
    %v133 = vld [vmem:[#allocation2 + $0x180] sm:$0xff]
    %v134 = vld [vmem:[#allocation2 + $0x188] sm:$0xff]
    %v135 = vld [vmem:[#allocation2 + $0x190] sm:$0xff]
    %v136 = vld [vmem:[#allocation2 + $0x198] sm:$0xff]
    %v137 = vld [vmem:[#allocation2 + $0x1a0] sm:$0xff]
    %v138 = vld [vmem:[#allocation2 + $0x1a8] sm:$0xff]
    %v139 = vld [vmem:[#allocation2 + $0x1b0] sm:$0xff]
    %v140 = vld [vmem:[#allocation2 + $0x1b8] sm:$0xff]
    %v141 = vld [vmem:[#allocation2 + $0x1c0] sm:$0xff]
    %v142 = vld [vmem:[#allocation2 + $0x1c8] sm:$0xff]
    %v143 = vld [vmem:[#allocation2 + $0x1d0] sm:$0xff]
    %v144 = vld [vmem:[#allocation2 + $0x1d8] sm:$0xff]
    %v145 = vld [vmem:[#allocation2 + $0x1e0] sm:$0xff]
    %v146 = vld [vmem:[#allocation2 + $0x1e8] sm:$0xff]
    %v147 = vld [vmem:[#allocation2 + $0x1f0] sm:$0xff]
    %v148 = vld [vmem:[#allocation2 + $0x1f8] sm:$0xff]
    %v149 = vld [vmem:[#allocation2 + $0x200] sm:$0xff]
    %v150 = vld [vmem:[#allocation2 + $0x208] sm:$0xff]
    %v151 = vld [vmem:[#allocation2 + $0x210] sm:$0xff]
    %v152 = vld [vmem:[#allocation2 + $0x218] sm:$0xff]
    %v153 = vld [vmem:[#allocation2 + $0x220] sm:$0xff]
    %v154 = vld [vmem:[#allocation2 + $0x228] sm:$0xff]
    %v155 = vld [vmem:[#allocation2 + $0x230] sm:$0xff]
    %v156 = vld [vmem:[#allocation2 + $0x238] sm:$0xff]
    %v157 = vld [vmem:[#allocation2 + $0x240] sm:$0xff]
    %v158 = vld [vmem:[#allocation2 + $0x248] sm:$0xff]
    %v159 = vld [vmem:[#allocation2 + $0x250] sm:$0xff]
    %v160 = vld [vmem:[#allocation2 + $0x258] sm:$0xff]
    %v161 = vld [vmem:[#allocation2 + $0x260] sm:$0xff]
    %v162 = vld [vmem:[#allocation2 + $0x268] sm:$0xff]
    %v163 = vld [vmem:[#allocation2 + $0x270] sm:$0xff]
    %v164 = vld [vmem:[#allocation2 + $0x278] sm:$0xff]
    %v165 = vld [vmem:[#allocation2 + $0x280] sm:$0xff]
    %v166 = vld [vmem:[#allocation2 + $0x288] sm:$0xff]
    %v167 = vld [vmem:[#allocation2 + $0x290] sm:$0xff]
    %v168 = vld [vmem:[#allocation2 + $0x298] sm:$0xff]
    %v169 = vld [vmem:[#allocation2 + $0x2a0] sm:$0xff]
    %v170 = vld [vmem:[#allocation2 + $0x2a8] sm:$0xff]
    %v171 = vld [vmem:[#allocation2 + $0x2b0] sm:$0xff]
    %v172 = vld [vmem:[#allocation2 + $0x2b8] sm:$0xff]
    %v173 = vld [vmem:[#allocation2 + $0x2c0] sm:$0xff]
    %v174 = vld [vmem:[#allocation2 + $0x2c8] sm:$0xff]
    %v175 = vld [vmem:[#allocation2 + $0x2d0] sm:$0xff]
    %v176 = vld [vmem:[#allocation2 + $0x2d8] sm:$0xff]
    %v177 = vld [vmem:[#allocation2 + $0x2e0] sm:$0xff]
    %v178 = vld [vmem:[#allocation2 + $0x2e8] sm:$0xff]
    %v179 = vld [vmem:[#allocation2 + $0x2f0] sm:$0xff]
    %v180 = vld [vmem:[#allocation2 + $0x2f8] sm:$0xff]
    %v181 = vld [vmem:[#allocation2 + $0x300] sm:$0xff]
    %v182 = vld [vmem:[#allocation2 + $0x308] sm:$0xff]
    %v183 = vld [vmem:[#allocation2 + $0x310] sm:$0xff]
    %v184 = vld [vmem:[#allocation2 + $0x318] sm:$0xff]
    %v185 = vld [vmem:[#allocation2 + $0x320] sm:$0xff]
    %v186 = vld [vmem:[#allocation2 + $0x328] sm:$0xff]
    %v187 = vld [vmem:[#allocation2 + $0x330] sm:$0xff]
    %v188 = vld [vmem:[#allocation2 + $0x338] sm:$0xff]
    %v189 = vld [vmem:[#allocation2 + $0x340] sm:$0xff]
    %v190 = vld [vmem:[#allocation2 + $0x348] sm:$0xff]
    %v191 = vld [vmem:[#allocation2 + $0x350] sm:$0xff]
    %v192 = vld [vmem:[#allocation2 + $0x358] sm:$0xff]
    %v193 = vld [vmem:[#allocation2 + $0x360] sm:$0xff]
    %v194 = vld [vmem:[#allocation2 + $0x368] sm:$0xff]
    %v195 = vld [vmem:[#allocation2 + $0x370] sm:$0xff]
    %v196 = vld [vmem:[#allocation2 + $0x378] sm:$0xff]
    %v197 = vld [vmem:[%s1] sm:$0xf]
    %v198 = vld [vmem:[#allocation4] sm:$0xff]
    %v199 = vld [vmem:[#allocation4 + $0x8] sm:$0xff]
    %v200 = vld [vmem:[#allocation4 + $0x10] sm:$0xff]
    %v201 = vld [vmem:[#allocation4 + $0x18] sm:$0xff]
    %v202 = vld [vmem:[#allocation4 + $0x20] sm:$0xff]
    %v203 = vld [vmem:[#allocation4 + $0x28] sm:$0xff]
    %v204 = vld [vmem:[#allocation4 + $0x30] sm:$0xff]
    %v205 = vld [vmem:[#allocation4 + $0x38] sm:$0xff]
    %v206 = vld [vmem:[#allocation4 + $0x40] sm:$0xff]
    %v207 = vld [vmem:[#allocation4 + $0x48] sm:$0xff]
    %v208 = vld [vmem:[#allocation4 + $0x50] sm:$0xff]
    %v209 = vld [vmem:[#allocation4 + $0x58] sm:$0xff]
    %v210 = vld [vmem:[#allocation4 + $0x60] sm:$0xff]
    %v211 = vld [vmem:[#allocation4 + $0x68] sm:$0xff]
    %v212 = vld [vmem:[#allocation4 + $0x70] sm:$0xff]
    %v213 = vld [vmem:[#allocation4 + $0x78] sm:$0xff]
    %v214 = vld [vmem:[#allocation4 + $0x80] sm:$0xff]
    %v215 = vld [vmem:[#allocation4 + $0x88] sm:$0xff]
    %v216 = vld [vmem:[#allocation4 + $0x90] sm:$0xff]
    %v217 = vld [vmem:[#allocation4 + $0x98] sm:$0xff]
    %v218 = vld [vmem:[#allocation4 + $0xa0] sm:$0xff]
    %v219 = vld [vmem:[#allocation4 + $0xa8] sm:$0xff]
    %v220 = vld [vmem:[#allocation4 + $0xb0] sm:$0xff]
    %v221 = vld [vmem:[#allocation4 + $0xb8] sm:$0xff]
    %v222 = vld [vmem:[#allocation4 + $0xc0] sm:$0xff]
    %v223 = vld [vmem:[#allocation4 + $0xc8] sm:$0xff]
    %v224 = vld [vmem:[#allocation4 + $0xd0] sm:$0xff]
    %v225 = vld [vmem:[#allocation4 + $0xd8] sm:$0xff]
    %v226 = vld [vmem:[#allocation4 + $0xe0] sm:$0xff]
    %v227 = vld [vmem:[#allocation4 + $0xe8] sm:$0xff]
    %v228 = vld [vmem:[#allocation4 + $0xf0] sm:$0xff]
    %v229 = vld [vmem:[#allocation4 + $0xf8] sm:$0xff]
    %v230 = vld [vmem:[#allocation4 + $0x100] sm:$0xff]
    %v231 = vld [vmem:[#allocation4 + $0x108] sm:$0xff]
    %v232 = vld [vmem:[#allocation4 + $0x110] sm:$0xff]
    %v233 = vld [vmem:[#allocation4 + $0x118] sm:$0xff]
    %v234 = vld [vmem:[#allocation4 + $0x120] sm:$0xff]
    %v235 = vld [vmem:[#allocation4 + $0x128] sm:$0xff]
    %v236 = vld [vmem:[#allocation4 + $0x130] sm:$0xff]
    %v237 = vld [vmem:[#allocation4 + $0x138] sm:$0xff]
    %v240 = vunpack.c.l.s4 1983009808
    %v241 = vunpack.c.0.s8 %v240
    %v242 = vlaneseq
    %v243 = vshrl.u32 %v242, 7
    %v244 = vsub.s32 %v241, %v243
    %v245 = vrot.slane %v197, %v244
    %v246 = vcombine.high %v245, %v245
    %vm248 = vcmask 261120
    %v249 = vsel %vm248, %v246, 0
    %251 = vmatprep.subr.mxu0 %v199
    %252 = vmatpush1.msra.mxu0 %v198
    %253 = vmatprep.subr.mxu0 %v201
    %254 = vmatpush1.msra.mxu0 %v200
    %255 = vmatprep.subr.mxu0 %v203
    %256 = vmatpush1.msra.mxu0 %v202
    %257 = vmatprep.subr.mxu0 %v205
    %258 = vmatpush1.msra.mxu0 %v204
    %259 = vmatprep.subr.mxu0 %v207
    %260 = vmatpush1.msra.mxu0 %v206
    %261 = vmatprep.subr.mxu0 %v209
    %262 = vmatpush1.msra.mxu0 %v208
    %263 = vmatprep.subr.mxu0 %v211
    %264 = vmatpush1.msra.mxu0 %v210
    %265 = vmatprep.subr.mxu0 %v213
    %266 = vmatpush1.msra.mxu0 %v212
    %267 = vmatprep.subr.mxu0 %v215
    %268 = vmatpush1.msra.mxu0 %v214
    %269 = vmatprep.subr.mxu0 %v217
    %270 = vmatpush1.msra.mxu0 %v216
    %271 = vmatprep.subr.mxu0 %v219
    %272 = vmatpush1.msra.mxu0 %v218
    %273 = vmatprep.subr.mxu0 %v221
    %274 = vmatpush1.msra.mxu0 %v220
    %275 = vmatprep.subr.mxu0 %v223
    %276 = vmatpush1.msra.mxu0 %v222
    %277 = vmatprep.subr.mxu0 %v225
    %278 = vmatpush1.msra.mxu0 %v224
    %279 = vmatprep.subr.mxu0 %v227
    %280 = vmatpush1.msra.mxu0 %v226
    %281 = vmatprep.subr.mxu0 %v229
    %282 = vmatpush1.msra.mxu0 %v228
    %283 = vmatprep.subr.mxu0 %v231
    %284 = vmatpush1.msra.mxu0 %v230
    %285 = vmatprep.subr.mxu0 %v233
    %286 = vmatpush1.msra.mxu0 %v232
    %287 = vmatprep.subr.mxu0 %v235
    %288 = vmatpush1.msra.mxu0 %v234
    %289 = vmatprep.subr.mxu0 %v237
    %290 = vmatpush1.msra.mxu0 %v236
    %291 = vmatprep.subr.mxu0 0.0
    %292 = vmatpush1.msra.mxu0 0.0
    %293 = vmatprep.subr.mxu0 0.0
    %294 = vmatpush1.msra.mxu0 0.0
    %295 = vmatprep.subr.mxu0 0.0
    %296 = vmatpush1.msra.mxu0 0.0
    %297 = vmatprep.subr.mxu0 0.0
    %298 = vmatpush1.msra.mxu0 0.0
    %299 = vmatprep.subr.mxu0 0.0
    %300 = vmatpush1.msra.mxu0 0.0
    %301 = vmatprep.subr.mxu0 0.0
    %302 = vmatpush1.msra.mxu0 0.0
    %303 = vmatprep.subr.mxu0 0.0
    %304 = vmatpush1.msra.mxu0 0.0
    %305 = vmatprep.subr.mxu0 0.0
    %306 = vmatpush1.msra.mxu0 0.0
    %307 = vmatprep.subr.mxu0 0.0
    %308 = vmatpush1.msra.mxu0 0.0
    %309 = vmatprep.subr.mxu0 0.0
    %310 = vmatpush1.msra.mxu0 0.0
    %311 = vmatprep.subr.mxu0 0.0
    %312 = vmatpush1.msra.mxu0 0.0
    %313 = vmatprep.subr.mxu0 0.0
    %314 = vmatpush1.msra.mxu0 0.0
    %315 = vmatprep.mubr.f32.mxu0 %v249
    %316 = vmatmul.mubr.f32.gmra.mrb[0].mxu0 %v245
    %v317 = vpop.f32.mrb[0].mxu0
    %v318 = vadd.f32 0.0, %v317
    %v319 = vpop.f32.mrb[0].mxu0
    %v320 = vadd.f32 0.0, %v319
    %321 = vdwg.mxu0
    %v322 = vtanh.pop %v318
    %v323 = vtanh.pop %v320
    %v324 = vmul.f32 %v322, 2.0
    %v325 = vmul.f32 %v323, 2.0
    %v327 = vcombine.high %v84, %v84
    %v329 = vunpack.c.l.s4 1983009808
    %v330 = vunpack.c.0.s8 %v329
    %v331 = vlaneseq
    %v332 = vshrl.u32 %v331, 7
    %v333 = vsub.s32 %v330, %v332
    %v334 = vrot.slane %v84, %v333
    %v336 = vunpack.c.l.s4 1983009808
    %v337 = vunpack.c.0.s8 %v336
    %v338 = vlaneseq
    %v339 = vshrl.u32 %v338, 7
    %v340 = vsub.s32 %v337, %v339
    %v341 = vrot.slane %v327, %v340
    %v342 = vcombine.high %v334, %v334
    %v343 = vcombine.high %v341, %v341
    %vm347 = vcmask 523264
    %v348 = vsel %vm347, %v343, 0
    %350 = vmatprep.subr.mxu0 %v86
    %351 = vmatpush1.msra.mxu0 %v85
    %352 = vmatprep.subr.mxu0 %v88
    %353 = vmatpush1.msra.mxu0 %v87
    %354 = vmatprep.subr.mxu0 %v90
    %355 = vmatpush1.msra.mxu0 %v89
    %356 = vmatprep.subr.mxu0 %v92
    %357 = vmatpush1.msra.mxu0 %v91
    %358 = vmatprep.subr.mxu0 %v94
    %359 = vmatpush1.msra.mxu0 %v93
    %360 = vmatprep.subr.mxu0 %v96
    %361 = vmatpush1.msra.mxu0 %v95
    %362 = vmatprep.subr.mxu0 %v98
    %363 = vmatpush1.msra.mxu0 %v97
    %364 = vmatprep.subr.mxu0 %v100
    %365 = vmatpush1.msra.mxu0 %v99
    %366 = vmatprep.subr.mxu0 %v102
    %367 = vmatpush1.msra.mxu0 %v101
    %368 = vmatprep.subr.mxu0 %v104
    %369 = vmatpush1.msra.mxu0 %v103
    %370 = vmatprep.subr.mxu0 %v106
    %371 = vmatpush1.msra.mxu0 %v105
    %372 = vmatprep.subr.mxu0 %v108
    %373 = vmatpush1.msra.mxu0 %v107
    %374 = vmatprep.subr.mxu0 %v110
    %375 = vmatpush1.msra.mxu0 %v109
    %376 = vmatprep.subr.mxu0 %v112
    %377 = vmatpush1.msra.mxu0 %v111
    %378 = vmatprep.subr.mxu0 %v114
    %379 = vmatpush1.msra.mxu0 %v113
    %380 = vmatprep.subr.mxu0 %v116
    %381 = vmatpush1.msra.mxu0 %v115
    %382 = vmatprep.subr.mxu0 %v118
    %383 = vmatpush1.msra.mxu0 %v117
    %384 = vmatprep.subr.mxu0 %v120
    %385 = vmatpush1.msra.mxu0 %v119
    %386 = vmatprep.subr.mxu0 %v122
    %387 = vmatpush1.msra.mxu0 %v121
    %388 = vmatprep.subr.mxu0 %v124
    %389 = vmatpush1.msra.mxu0 %v123
    %390 = vmatprep.subr.mxu0 %v126
    %391 = vmatpush1.msra.mxu0 %v125
    %392 = vmatprep.subr.mxu0 %v128
    %393 = vmatpush1.msra.mxu0 %v127
    %394 = vmatprep.subr.mxu0 %v130
    %395 = vmatpush1.msra.mxu0 %v129
    %396 = vmatprep.subr.mxu0 %v132
    %397 = vmatpush1.msra.mxu0 %v131
    %398 = vmatprep.subr.mxu0 %v134
    %399 = vmatpush1.msra.mxu0 %v133
    %400 = vmatprep.subr.mxu0 %v136
    %401 = vmatpush1.msra.mxu0 %v135
    %402 = vmatprep.subr.mxu0 %v138
    %403 = vmatpush1.msra.mxu0 %v137
    %404 = vmatprep.subr.mxu0 %v140
    %405 = vmatpush1.msra.mxu0 %v139
    %406 = vmatprep.subr.mxu0 %v142
    %407 = vmatpush1.msra.mxu0 %v141
    %408 = vmatprep.subr.mxu0 %v144
    %409 = vmatpush1.msra.mxu0 %v143
    %410 = vmatprep.subr.mxu0 %v146
    %411 = vmatpush1.msra.mxu0 %v145
    %412 = vmatprep.subr.mxu0 %v148
    %413 = vmatpush1.msra.mxu0 %v147
    %414 = vmatprep.mubr.f32.mxu0 %v342
    %415 = vmatmul.mubr.f32.gmra.mrb[0].mxu0 %v334
    %v416 = vpop.f32.mrb[0].mxu0
    %v417 = vadd.f32 %v324, %v416
    %v418 = vpop.f32.mrb[0].mxu0
    %v419 = vadd.f32 %v325, %v418
    %420 = vdwg.mxu0
    %421 = vmatprep.subr.mxu0 %v150
    %422 = vmatpush1.msra.mxu0 %v149
    %423 = vmatprep.subr.mxu0 %v152
    %424 = vmatpush1.msra.mxu0 %v151
    %425 = vmatprep.subr.mxu0 %v154
    %426 = vmatpush1.msra.mxu0 %v153
    %427 = vmatprep.subr.mxu0 %v156
    %428 = vmatpush1.msra.mxu0 %v155
    %429 = vmatprep.subr.mxu0 %v158
    %430 = vmatpush1.msra.mxu0 %v157
    %431 = vmatprep.subr.mxu0 %v160
    %432 = vmatpush1.msra.mxu0 %v159
    %433 = vmatprep.subr.mxu0 %v162
    %434 = vmatpush1.msra.mxu0 %v161
    %435 = vmatprep.subr.mxu0 %v164
    %436 = vmatpush1.msra.mxu0 %v163
    %437 = vmatprep.subr.mxu0 %v166
    %438 = vmatpush1.msra.mxu0 %v165
    %439 = vmatprep.subr.mxu0 %v168
    %440 = vmatpush1.msra.mxu0 %v167
    %441 = vmatprep.subr.mxu0 %v170
    %442 = vmatpush1.msra.mxu0 %v169
    %443 = vmatprep.subr.mxu0 %v172
    %444 = vmatpush1.msra.mxu0 %v171
    %445 = vmatprep.subr.mxu0 %v174
    %446 = vmatpush1.msra.mxu0 %v173
    %447 = vmatprep.subr.mxu0 %v176
    %448 = vmatpush1.msra.mxu0 %v175
    %449 = vmatprep.subr.mxu0 %v178
    %450 = vmatpush1.msra.mxu0 %v177
    %451 = vmatprep.subr.mxu0 %v180
    %452 = vmatpush1.msra.mxu0 %v179
    %453 = vmatprep.subr.mxu0 %v182
    %454 = vmatpush1.msra.mxu0 %v181
    %455 = vmatprep.subr.mxu0 %v184
    %456 = vmatpush1.msra.mxu0 %v183
    %457 = vmatprep.subr.mxu0 %v186
    %458 = vmatpush1.msra.mxu0 %v185
    %459 = vmatprep.subr.mxu0 %v188
    %460 = vmatpush1.msra.mxu0 %v187
    %461 = vmatprep.subr.mxu0 %v190
    %462 = vmatpush1.msra.mxu0 %v189
    %463 = vmatprep.subr.mxu0 %v192
    %464 = vmatpush1.msra.mxu0 %v191
    %465 = vmatprep.subr.mxu0 %v194
    %466 = vmatpush1.msra.mxu0 %v193
    %467 = vmatprep.subr.mxu0 %v196
    %468 = vmatpush1.msra.mxu0 %v195
    %469 = vmatprep.subr.mxu0 0.0
    %470 = vmatpush1.msra.mxu0 0.0
    %471 = vmatprep.subr.mxu0 0.0
    %472 = vmatpush1.msra.mxu0 0.0
    %473 = vmatprep.subr.mxu0 0.0
    %474 = vmatpush1.msra.mxu0 0.0
    %475 = vmatprep.subr.mxu0 0.0
    %476 = vmatpush1.msra.mxu0 0.0
    %477 = vmatprep.subr.mxu0 0.0
    %478 = vmatpush1.msra.mxu0 0.0
    %479 = vmatprep.subr.mxu0 0.0
    %480 = vmatpush1.msra.mxu0 0.0
    %481 = vmatprep.subr.mxu0 0.0
    %482 = vmatpush1.msra.mxu0 0.0
    %483 = vmatprep.subr.mxu0 0.0
    %484 = vmatpush1.msra.mxu0 0.0
    %485 = vmatprep.mubr.f32.mxu0 %v348
    %486 = vmatmul.mubr.f32.gmra.mrb[0].mxu0 %v341
    %v487 = vpop.f32.mrb[0].mxu0
    %v488 = vadd.f32 %v417, %v487
    %v489 = vpop.f32.mrb[0].mxu0
    %v490 = vadd.f32 %v419, %v489
    %491 = vdwg.mxu0
    %v494 = vcombine.low %v488, %v490
    %v496 = vunpack.c.l.s4 1983009808
    %v497 = vunpack.c.0.s8 %v496
    %v498 = vlaneseq
    %v499 = vshrl.u32 %v498, 7
    %v500 = vsub.s32 %v497, %v499
    %v501 = vrot.slane %v494, %v500
    %503 = vst [vmem:[%s13] sm:$0xf] %v501
    %v504 = vld [vmem:[%s4] sm:$0xff]
    %v505 = vld [vmem:[%s4 + $0x8] sm:$0xff]
    %v506 = vld [vmem:[%s4 + $0x10] sm:$0xff]
    %v507 = vld [vmem:[%s4 + $0x18] sm:$0xff]
    %v508 = vld [vmem:[%s4 + $0x20] sm:$0xff]
    %v509 = vld [vmem:[%s4 + $0x28] sm:$0xff]
    %v510 = vld [vmem:[%s4 + $0x30] sm:$0xff]
    %v511 = vld [vmem:[%s4 + $0x38] sm:$0xff]
    %v512 = vld [vmem:[%s4 + $0x40] sm:$0xff]
    %v513 = vld [vmem:[%s4 + $0x48] sm:$0xff]
    %v514 = vld [vmem:[%s4 + $0x50] sm:$0xff]
    %v515 = vld [vmem:[%s4 + $0x58] sm:$0xff]
    %v516 = vld [vmem:[%s4 + $0x60] sm:$0xff]
    %v517 = vld [vmem:[%s4 + $0x68] sm:$0xff]
    %v518 = vld [vmem:[%s4 + $0x70] sm:$0xff]
    %v519 = vld [vmem:[%s4 + $0x78] sm:$0xff]
    %v520 = vld [vmem:[%s4 + $0x80] sm:$0xff]
    %v521 = vld [vmem:[%s4 + $0x88] sm:$0xff]
    %v522 = vld [vmem:[%s4 + $0x90] sm:$0xff]
    %v523 = vld [vmem:[%s4 + $0x98] sm:$0xff]
    %v524 = vld [vmem:[%s4 + $0xa0] sm:$0xff]
    %v525 = vld [vmem:[%s4 + $0xa8] sm:$0xff]
    %v526 = vld [vmem:[%s4 + $0xb0] sm:$0xff]
    %v527 = vld [vmem:[%s4 + $0xb8] sm:$0xff]
    %v528 = vld [vmem:[%s4 + $0xc0] sm:$0xff]
    %v529 = vld [vmem:[%s4 + $0xc8] sm:$0xff]
    %v530 = vld [vmem:[%s4 + $0xd0] sm:$0xff]
    %v531 = vld [vmem:[%s4 + $0xd8] sm:$0xff]
    %v532 = vld [vmem:[%s4 + $0xe0] sm:$0xff]
    %v533 = vld [vmem:[%s4 + $0xe8] sm:$0xff]
    %v534 = vld [vmem:[%s4 + $0xf0] sm:$0xff]
    %v535 = vld [vmem:[%s4 + $0xf8] sm:$0xff]
    %v536 = vld [vmem:[%s4 + $0x100] sm:$0xff]
    %v537 = vld [vmem:[%s4 + $0x108] sm:$0xff]
    %v538 = vld [vmem:[%s4 + $0x110] sm:$0xff]
    %v539 = vld [vmem:[%s4 + $0x118] sm:$0xff]
    %v540 = vld [vmem:[%s4 + $0x120] sm:$0xff]
    %v541 = vld [vmem:[%s4 + $0x128] sm:$0xff]
    %v542 = vld [vmem:[%s4 + $0x130] sm:$0xff]
    %v543 = vld [vmem:[%s4 + $0x138] sm:$0xff]
    %v544 = vld [vmem:[%s4 + $0x140] sm:$0xff]
    %v545 = vld [vmem:[%s4 + $0x148] sm:$0xff]
    %v546 = vld [vmem:[%s4 + $0x150] sm:$0xff]
    %v547 = vld [vmem:[%s4 + $0x158] sm:$0xff]
    %v548 = vld [vmem:[%s4 + $0x160] sm:$0xff]
    %v549 = vld [vmem:[%s4 + $0x168] sm:$0xff]
    %v550 = vld [vmem:[%s4 + $0x170] sm:$0xff]
    %v551 = vld [vmem:[%s4 + $0x178] sm:$0xff]
    %v552 = vld [vmem:[%s4 + $0x180] sm:$0xff]
    %v553 = vld [vmem:[%s4 + $0x188] sm:$0xff]
    %v554 = vld [vmem:[%s4 + $0x190] sm:$0xff]
    %v555 = vld [vmem:[%s4 + $0x198] sm:$0xff]
    %v556 = vld [vmem:[%s4 + $0x1a0] sm:$0xff]
    %v557 = vld [vmem:[%s4 + $0x1a8] sm:$0xff]
    %v558 = vld [vmem:[%s4 + $0x1b0] sm:$0xff]
    %v559 = vld [vmem:[%s4 + $0x1b8] sm:$0xff]
    %v560 = vld [vmem:[%s4 + $0x1c0] sm:$0xff]
    %v561 = vld [vmem:[%s4 + $0x1c8] sm:$0xff]
    %v562 = vld [vmem:[%s4 + $0x1d0] sm:$0xff]
    %v563 = vld [vmem:[%s4 + $0x1d8] sm:$0xff]
    %v564 = vld [vmem:[%s4 + $0x1e0] sm:$0xff]
    %v565 = vld [vmem:[%s4 + $0x1e8] sm:$0xff]
    %v566 = vld [vmem:[%s4 + $0x1f0] sm:$0xff]
    %v567 = vld [vmem:[%s4 + $0x1f8] sm:$0xff]
    %v568 = vld [vmem:[%s5] sm:$0x3]
    %v570 = vlaneseq
    %v571 = vshrl.u32 %v570, 7
    %v572 = vsub.s32 0, %v571
    %v573 = vrot.slane %v568, %v572
    %v574 = vlaneseq
    %v575 = vshrl.u32 %v574, 7
    %v576 = vsub.s32 1, %v575
    %v577 = vrot.slane %v568, %v576
    %580 = vmatprep.subr.mxu0 %v505
    %581 = vmatpush1.msra.mxu0 %v504
    %582 = vmatprep.subr.mxu0 %v507
    %583 = vmatpush1.msra.mxu0 %v506
    %584 = vmatprep.subr.mxu0 %v509
    %585 = vmatpush1.msra.mxu0 %v508
    %586 = vmatprep.subr.mxu0 %v511
    %587 = vmatpush1.msra.mxu0 %v510
    %588 = vmatprep.subr.mxu0 %v513
    %589 = vmatpush1.msra.mxu0 %v512
    %590 = vmatprep.subr.mxu0 %v515
    %591 = vmatpush1.msra.mxu0 %v514
    %592 = vmatprep.subr.mxu0 %v517
    %593 = vmatpush1.msra.mxu0 %v516
    %594 = vmatprep.subr.mxu0 %v519
    %595 = vmatpush1.msra.mxu0 %v518
    %596 = vmatprep.subr.mxu0 %v521
    %597 = vmatpush1.msra.mxu0 %v520
    %598 = vmatprep.subr.mxu0 %v523
    %599 = vmatpush1.msra.mxu0 %v522
    %600 = vmatprep.subr.mxu0 %v525
    %601 = vmatpush1.msra.mxu0 %v524
    %602 = vmatprep.subr.mxu0 %v527
    %603 = vmatpush1.msra.mxu0 %v526
    %604 = vmatprep.subr.mxu0 %v529
    %605 = vmatpush1.msra.mxu0 %v528
    %606 = vmatprep.subr.mxu0 %v531
    %607 = vmatpush1.msra.mxu0 %v530
    %608 = vmatprep.subr.mxu0 %v533
    %609 = vmatpush1.msra.mxu0 %v532
    %610 = vmatprep.subr.mxu0 %v535
    %611 = vmatpush1.msra.mxu0 %v534
    %612 = vmatprep.subr.mxu0 %v537
    %613 = vmatpush1.msra.mxu0 %v536
    %614 = vmatprep.subr.mxu0 %v539
    %615 = vmatpush1.msra.mxu0 %v538
    %616 = vmatprep.subr.mxu0 %v541
    %617 = vmatpush1.msra.mxu0 %v540
    %618 = vmatprep.subr.mxu0 %v543
    %619 = vmatpush1.msra.mxu0 %v542
    %620 = vmatprep.subr.mxu0 %v545
    %621 = vmatpush1.msra.mxu0 %v544
    %622 = vmatprep.subr.mxu0 %v547
    %623 = vmatpush1.msra.mxu0 %v546
    %624 = vmatprep.subr.mxu0 %v549
    %625 = vmatpush1.msra.mxu0 %v548
    %626 = vmatprep.subr.mxu0 %v551
    %627 = vmatpush1.msra.mxu0 %v550
    %628 = vmatprep.subr.mxu0 %v553
    %629 = vmatpush1.msra.mxu0 %v552
    %630 = vmatprep.subr.mxu0 %v555
    %631 = vmatpush1.msra.mxu0 %v554
    %632 = vmatprep.subr.mxu0 %v557
    %633 = vmatpush1.msra.mxu0 %v556
    %634 = vmatprep.subr.mxu0 %v559
    %635 = vmatpush1.msra.mxu0 %v558
    %636 = vmatprep.subr.mxu0 %v561
    %637 = vmatpush1.msra.mxu0 %v560
    %638 = vmatprep.subr.mxu0 %v563
    %639 = vmatpush1.msra.mxu0 %v562
    %640 = vmatprep.subr.mxu0 %v565
    %641 = vmatpush1.msra.mxu0 %v564
    %642 = vmatprep.subr.mxu0 %v567
    %643 = vmatpush1.msra.mxu0 %v566
    %644 = vmatprep.mubr.f32.mxu0 %v490
    %645 = vmatmul.mubr.f32.gmra.mrb[0].mxu0 %v488
    %v646 = vpop.f32.mrb[0].mxu0
    %v647 = vadd.f32 %v573, %v646
    %v648 = vpop.f32.mrb[0].mxu0
    %v649 = vadd.f32 %v577, %v648
    %650 = vdwg.mxu0
    %v651 = vtanh.pop %v647
    %v652 = vtanh.pop %v649
    %v653 = vld [vmem:[%s6] sm:$0xff]
    %v654 = vld [vmem:[%s6 + $0x8] sm:$0xff]
    %v655 = vld [vmem:[%s6 + $0x10] sm:$0xff]
    %v656 = vld [vmem:[%s6 + $0x18] sm:$0xff]
    %v657 = vld [vmem:[%s6 + $0x20] sm:$0xff]
    %v658 = vld [vmem:[%s6 + $0x28] sm:$0xff]
    %v659 = vld [vmem:[%s6 + $0x30] sm:$0xff]
    %v660 = vld [vmem:[%s6 + $0x38] sm:$0xff]
    %v661 = vld [vmem:[%s6 + $0x40] sm:$0xff]
    %v662 = vld [vmem:[%s6 + $0x48] sm:$0xff]
    %v663 = vld [vmem:[%s6 + $0x50] sm:$0xff]
    %v664 = vld [vmem:[%s6 + $0x58] sm:$0xff]
    %v665 = vld [vmem:[%s6 + $0x60] sm:$0xff]
    %v666 = vld [vmem:[%s6 + $0x68] sm:$0xff]
    %v667 = vld [vmem:[%s6 + $0x70] sm:$0xff]
    %v668 = vld [vmem:[%s6 + $0x78] sm:$0xff]
    %v669 = vld [vmem:[%s6 + $0x80] sm:$0xff]
    %v670 = vld [vmem:[%s6 + $0x88] sm:$0xff]
    %v671 = vld [vmem:[%s6 + $0x90] sm:$0xff]
    %v672 = vld [vmem:[%s6 + $0x98] sm:$0xff]
    %v673 = vld [vmem:[%s6 + $0xa0] sm:$0xff]
    %v674 = vld [vmem:[%s6 + $0xa8] sm:$0xff]
    %v675 = vld [vmem:[%s6 + $0xb0] sm:$0xff]
    %v676 = vld [vmem:[%s6 + $0xb8] sm:$0xff]
    %v677 = vld [vmem:[%s6 + $0xc0] sm:$0xff]
    %v678 = vld [vmem:[%s6 + $0xc8] sm:$0xff]
    %v679 = vld [vmem:[%s6 + $0xd0] sm:$0xff]
    %v680 = vld [vmem:[%s6 + $0xd8] sm:$0xff]
    %v681 = vld [vmem:[%s6 + $0xe0] sm:$0xff]
    %v682 = vld [vmem:[%s6 + $0xe8] sm:$0xff]
    %v683 = vld [vmem:[%s6 + $0xf0] sm:$0xff]
    %v684 = vld [vmem:[%s6 + $0xf8] sm:$0xff]
    %v685 = vld [vmem:[%s7] sm:$0x1]
    %v687 = vlaneseq
    %v688 = vshrl.u32 %v687, 7
    %v689 = vsub.s32 0, %v688
    %v690 = vrot.slane %v685, %v689
    %692 = vmatprep.subr.mxu0 0.0
    %693 = vmatpush1.msra.mxu0 %v653
    %694 = vmatprep.subr.mxu0 0.0
    %695 = vmatpush1.msra.mxu0 %v654
    %696 = vmatprep.subr.mxu0 0.0
    %697 = vmatpush1.msra.mxu0 %v655
    %698 = vmatprep.subr.mxu0 0.0
    %699 = vmatpush1.msra.mxu0 %v656
    %700 = vmatprep.subr.mxu0 0.0
    %701 = vmatpush1.msra.mxu0 %v657
    %702 = vmatprep.subr.mxu0 0.0
    %703 = vmatpush1.msra.mxu0 %v658
    %704 = vmatprep.subr.mxu0 0.0
    %705 = vmatpush1.msra.mxu0 %v659
    %706 = vmatprep.subr.mxu0 0.0
    %707 = vmatpush1.msra.mxu0 %v660
    %708 = vmatprep.subr.mxu0 0.0
    %709 = vmatpush1.msra.mxu0 %v661
    %710 = vmatprep.subr.mxu0 0.0
    %711 = vmatpush1.msra.mxu0 %v662
    %712 = vmatprep.subr.mxu0 0.0
    %713 = vmatpush1.msra.mxu0 %v663
    %714 = vmatprep.subr.mxu0 0.0
    %715 = vmatpush1.msra.mxu0 %v664
    %716 = vmatprep.subr.mxu0 0.0
    %717 = vmatpush1.msra.mxu0 %v665
    %718 = vmatprep.subr.mxu0 0.0
    %719 = vmatpush1.msra.mxu0 %v666
    %720 = vmatprep.subr.mxu0 0.0
    %721 = vmatpush1.msra.mxu0 %v667
    %722 = vmatprep.subr.mxu0 0.0
    %723 = vmatpush1.msra.mxu0 %v668
    %724 = vmatprep.subr.mxu0 0.0
    %725 = vmatpush1.msra.mxu0 %v669
    %726 = vmatprep.subr.mxu0 0.0
    %727 = vmatpush1.msra.mxu0 %v670
    %728 = vmatprep.subr.mxu0 0.0
    %729 = vmatpush1.msra.mxu0 %v671
    %730 = vmatprep.subr.mxu0 0.0
    %731 = vmatpush1.msra.mxu0 %v672
    %732 = vmatprep.subr.mxu0 0.0
    %733 = vmatpush1.msra.mxu0 %v673
    %734 = vmatprep.subr.mxu0 0.0
    %735 = vmatpush1.msra.mxu0 %v674
    %736 = vmatprep.subr.mxu0 0.0
    %737 = vmatpush1.msra.mxu0 %v675
    %738 = vmatprep.subr.mxu0 0.0
    %739 = vmatpush1.msra.mxu0 %v676
    %740 = vmatprep.subr.mxu0 0.0
    %741 = vmatpush1.msra.mxu0 %v677
    %742 = vmatprep.subr.mxu0 0.0
    %743 = vmatpush1.msra.mxu0 %v678
    %744 = vmatprep.subr.mxu0 0.0
    %745 = vmatpush1.msra.mxu0 %v679
    %746 = vmatprep.subr.mxu0 0.0
    %747 = vmatpush1.msra.mxu0 %v680
    %748 = vmatprep.subr.mxu0 0.0
    %749 = vmatpush1.msra.mxu0 %v681
    %750 = vmatprep.subr.mxu0 0.0
    %751 = vmatpush1.msra.mxu0 %v682
    %752 = vmatprep.subr.mxu0 0.0
    %753 = vmatpush1.msra.mxu0 %v683
    %754 = vmatprep.subr.mxu0 0.0
    %755 = vmatpush1.msra.mxu0 %v684
    %756 = vmatprep.mubr.f32.mxu0 %v652
    %757 = vmatmul.mubr.f32.gmra.mrb[0].mxu0 %v651
    %v758 = vpop.f32.mrb[0].mxu0
    %v759 = vadd.f32 %v690, %v758
    %v760 = vpop.f32.mrb[0].mxu0
    %761 = vdwg.mxu0
    %v762 = vld [vmem:[%s8] sm:$0xff]
    %v763 = vld [vmem:[%s8 + $0x8] sm:$0xff]
    %v764 = vld [vmem:[%s8 + $0x10] sm:$0xff]
    %v765 = vld [vmem:[%s8 + $0x18] sm:$0xff]
    %v766 = vld [vmem:[%s9] sm:$0x3]
    %v768 = vlaneseq
    %v769 = vshrl.u32 %v768, 7
    %v770 = vsub.s32 0, %v769
    %v771 = vrot.slane %v766, %v770
    %v772 = vlaneseq
    %v773 = vshrl.u32 %v772, 7
    %v774 = vsub.s32 1, %v773
    %v775 = vrot.slane %v766, %v774
    %vm778 = vcmask 130048
    %v780 = vsel %vm778, %v759, 0
    %782 = vmatprep.subr.mxu0 %v763
    %783 = vmatpush1.msra.mxu0 %v762
    %784 = vmatprep.subr.mxu0 %v765
    %785 = vmatpush1.msra.mxu0 %v764
    %786 = vmatprep.subr.mxu0 0.0
    %787 = vmatpush1.msra.mxu0 0.0
    %788 = vmatprep.subr.mxu0 0.0
    %789 = vmatpush1.msra.mxu0 0.0
    %790 = vmatprep.subr.mxu0 0.0
    %791 = vmatpush1.msra.mxu0 0.0
    %792 = vmatprep.subr.mxu0 0.0
    %793 = vmatpush1.msra.mxu0 0.0
    %794 = vmatprep.subr.mxu0 0.0
    %795 = vmatpush1.msra.mxu0 0.0
    %796 = vmatprep.subr.mxu0 0.0
    %797 = vmatpush1.msra.mxu0 0.0
    %798 = vmatprep.subr.mxu0 0.0
    %799 = vmatpush1.msra.mxu0 0.0
    %800 = vmatprep.subr.mxu0 0.0
    %801 = vmatpush1.msra.mxu0 0.0
    %802 = vmatprep.subr.mxu0 0.0
    %803 = vmatpush1.msra.mxu0 0.0
    %804 = vmatprep.subr.mxu0 0.0
    %805 = vmatpush1.msra.mxu0 0.0
    %806 = vmatprep.subr.mxu0 0.0
    %807 = vmatpush1.msra.mxu0 0.0
    %808 = vmatprep.subr.mxu0 0.0
    %809 = vmatpush1.msra.mxu0 0.0
    %810 = vmatprep.subr.mxu0 0.0
    %811 = vmatpush1.msra.mxu0 0.0
    %812 = vmatprep.subr.mxu0 0.0
    %813 = vmatpush1.msra.mxu0 0.0
    %814 = vmatprep.subr.mxu0 0.0
    %815 = vmatpush1.msra.mxu0 0.0
    %816 = vmatprep.subr.mxu0 0.0
    %817 = vmatpush1.msra.mxu0 0.0
    %818 = vmatprep.subr.mxu0 0.0
    %819 = vmatpush1.msra.mxu0 0.0
    %820 = vmatprep.subr.mxu0 0.0
    %821 = vmatpush1.msra.mxu0 0.0
    %822 = vmatprep.subr.mxu0 0.0
    %823 = vmatpush1.msra.mxu0 0.0
    %824 = vmatprep.subr.mxu0 0.0
    %825 = vmatpush1.msra.mxu0 0.0
    %826 = vmatprep.subr.mxu0 0.0
    %827 = vmatpush1.msra.mxu0 0.0
    %828 = vmatprep.subr.mxu0 0.0
    %829 = vmatpush1.msra.mxu0 0.0
    %830 = vmatprep.subr.mxu0 0.0
    %831 = vmatpush1.msra.mxu0 0.0
    %832 = vmatprep.subr.mxu0 0.0
    %833 = vmatpush1.msra.mxu0 0.0
    %834 = vmatprep.subr.mxu0 0.0
    %835 = vmatpush1.msra.mxu0 0.0
    %836 = vmatprep.subr.mxu0 0.0
    %837 = vmatpush1.msra.mxu0 0.0
    %838 = vmatprep.subr.mxu0 0.0
    %839 = vmatpush1.msra.mxu0 0.0
    %840 = vmatprep.subr.mxu0 0.0
    %841 = vmatpush1.msra.mxu0 0.0
    %842 = vmatprep.subr.mxu0 0.0
    %843 = vmatpush1.msra.mxu0 0.0
    %844 = vmatprep.subr.mxu0 0.0
    %845 = vmatpush1.msra.mxu0 0.0
    %846 = vmatprep.mubr.f32.mxu0 0.0
    %847 = vmatmul.mubr.f32.gmra.mrb[0].mxu0 %v780
    %v848 = vpop.f32.mrb[0].mxu0
    %v849 = vadd.f32 %v771, %v848
    %v850 = vpop.f32.mrb[0].mxu0
    %v851 = vadd.f32 %v775, %v850
    %852 = vdwg.mxu0
    %v853 = vtanh.pop %v849
    %v854 = vtanh.pop %v851
    %v855 = vld [vmem:[#allocation6] sm:$0xff]
    %v856 = vld [vmem:[#allocation6 + $0x8] sm:$0xff]
    %v857 = vld [vmem:[#allocation6 + $0x10] sm:$0xff]
    %v858 = vld [vmem:[#allocation6 + $0x18] sm:$0xff]
    %v859 = vld [vmem:[#allocation6 + $0x20] sm:$0xff]
    %v860 = vld [vmem:[#allocation6 + $0x28] sm:$0xff]
    %v861 = vld [vmem:[#allocation6 + $0x30] sm:$0xff]
    %v862 = vld [vmem:[#allocation6 + $0x38] sm:$0xff]
    %v863 = vld [vmem:[#allocation6 + $0x40] sm:$0xff]
    %v864 = vld [vmem:[#allocation6 + $0x48] sm:$0xff]
    %v865 = vld [vmem:[#allocation6 + $0x50] sm:$0xff]
    %v866 = vld [vmem:[#allocation6 + $0x58] sm:$0xff]
    %v867 = vld [vmem:[#allocation6 + $0x60] sm:$0xff]
    %v868 = vld [vmem:[#allocation6 + $0x68] sm:$0xff]
    %v869 = vld [vmem:[#allocation6 + $0x70] sm:$0xff]
    %v870 = vld [vmem:[#allocation6 + $0x78] sm:$0xff]
    %v871 = vld [vmem:[#allocation6 + $0x80] sm:$0xff]
    %v872 = vld [vmem:[#allocation6 + $0x88] sm:$0xff]
    %v873 = vld [vmem:[#allocation6 + $0x90] sm:$0xff]
    %v874 = vld [vmem:[#allocation6 + $0x98] sm:$0xff]
    %v875 = vld [vmem:[#allocation6 + $0xa0] sm:$0xff]
    %v876 = vld [vmem:[#allocation6 + $0xa8] sm:$0xff]
    %v877 = vld [vmem:[#allocation6 + $0xb0] sm:$0xff]
    %v878 = vld [vmem:[#allocation6 + $0xb8] sm:$0xff]
    %v879 = vld [vmem:[#allocation6 + $0xc0] sm:$0xff]
    %v880 = vld [vmem:[#allocation6 + $0xc8] sm:$0xff]
    %v881 = vld [vmem:[#allocation6 + $0xd0] sm:$0xff]
    %v882 = vld [vmem:[#allocation6 + $0xd8] sm:$0xff]
    %v883 = vld [vmem:[#allocation6 + $0xe0] sm:$0xff]
    %v884 = vld [vmem:[#allocation6 + $0xe8] sm:$0xff]
    %v885 = vld [vmem:[#allocation6 + $0xf0] sm:$0xff]
    %v886 = vld [vmem:[#allocation6 + $0xf8] sm:$0xff]
    %v887 = vld [vmem:[#allocation6 + $0x100] sm:$0xff]
    %v888 = vld [vmem:[#allocation6 + $0x108] sm:$0xff]
    %v889 = vld [vmem:[#allocation6 + $0x110] sm:$0xff]
    %v890 = vld [vmem:[#allocation6 + $0x118] sm:$0xff]
    %v891 = vld [vmem:[#allocation6 + $0x120] sm:$0xff]
    %v892 = vld [vmem:[#allocation6 + $0x128] sm:$0xff]
    %v893 = vld [vmem:[#allocation6 + $0x130] sm:$0xff]
    %v894 = vld [vmem:[#allocation6 + $0x138] sm:$0xff]
    %v895 = vld [vmem:[#allocation6 + $0x140] sm:$0xff]
    %v896 = vld [vmem:[#allocation6 + $0x148] sm:$0xff]
    %v897 = vld [vmem:[#allocation6 + $0x150] sm:$0xff]
    %v898 = vld [vmem:[#allocation6 + $0x158] sm:$0xff]
    %v899 = vld [vmem:[#allocation6 + $0x160] sm:$0xff]
    %v900 = vld [vmem:[#allocation6 + $0x168] sm:$0xff]
    %v901 = vld [vmem:[#allocation6 + $0x170] sm:$0xff]
    %v902 = vld [vmem:[#allocation6 + $0x178] sm:$0xff]
    %v903 = vld [vmem:[#allocation6 + $0x180] sm:$0xff]
    %v904 = vld [vmem:[#allocation6 + $0x188] sm:$0xff]
    %v905 = vld [vmem:[#allocation6 + $0x190] sm:$0xff]
    %v906 = vld [vmem:[#allocation6 + $0x198] sm:$0xff]
    %v907 = vld [vmem:[#allocation6 + $0x1a0] sm:$0xff]
    %v908 = vld [vmem:[#allocation6 + $0x1a8] sm:$0xff]
    %v909 = vld [vmem:[#allocation6 + $0x1b0] sm:$0xff]
    %v910 = vld [vmem:[#allocation6 + $0x1b8] sm:$0xff]
    %v911 = vld [vmem:[#allocation6 + $0x1c0] sm:$0xff]
    %v912 = vld [vmem:[#allocation6 + $0x1c8] sm:$0xff]
    %v913 = vld [vmem:[#allocation6 + $0x1d0] sm:$0xff]
    %v914 = vld [vmem:[#allocation6 + $0x1d8] sm:$0xff]
    %v915 = vld [vmem:[#allocation6 + $0x1e0] sm:$0xff]
    %v916 = vld [vmem:[#allocation6 + $0x1e8] sm:$0xff]
    %v917 = vld [vmem:[#allocation6 + $0x1f0] sm:$0xff]
    %v918 = vld [vmem:[#allocation6 + $0x1f8] sm:$0xff]
    %v919 = vld [vmem:[%s11] sm:$0x3]
    %v921 = vlaneseq
    %v922 = vshrl.u32 %v921, 7
    %v923 = vsub.s32 0, %v922
    %v924 = vrot.slane %v919, %v923
    %v925 = vlaneseq
    %v926 = vshrl.u32 %v925, 7
    %v927 = vsub.s32 1, %v926
    %v928 = vrot.slane %v919, %v927
    %931 = vmatprep.subr.mxu0 %v856
    %932 = vmatpush1.msra.mxu0 %v855
    %933 = vmatprep.subr.mxu0 %v858
    %934 = vmatpush1.msra.mxu0 %v857
    %935 = vmatprep.subr.mxu0 %v860
    %936 = vmatpush1.msra.mxu0 %v859
    %937 = vmatprep.subr.mxu0 %v862
    %938 = vmatpush1.msra.mxu0 %v861
    %939 = vmatprep.subr.mxu0 %v864
    %940 = vmatpush1.msra.mxu0 %v863
    %941 = vmatprep.subr.mxu0 %v866
    %942 = vmatpush1.msra.mxu0 %v865
    %943 = vmatprep.subr.mxu0 %v868
    %944 = vmatpush1.msra.mxu0 %v867
    %945 = vmatprep.subr.mxu0 %v870
    %946 = vmatpush1.msra.mxu0 %v869
    %947 = vmatprep.subr.mxu0 %v872
    %948 = vmatpush1.msra.mxu0 %v871
    %949 = vmatprep.subr.mxu0 %v874
    %950 = vmatpush1.msra.mxu0 %v873
    %951 = vmatprep.subr.mxu0 %v876
    %952 = vmatpush1.msra.mxu0 %v875
    %953 = vmatprep.subr.mxu0 %v878
    %954 = vmatpush1.msra.mxu0 %v877
    %955 = vmatprep.subr.mxu0 %v880
    %956 = vmatpush1.msra.mxu0 %v879
    %957 = vmatprep.subr.mxu0 %v882
    %958 = vmatpush1.msra.mxu0 %v881
    %959 = vmatprep.subr.mxu0 %v884
    %960 = vmatpush1.msra.mxu0 %v883
    %961 = vmatprep.subr.mxu0 %v886
    %962 = vmatpush1.msra.mxu0 %v885
    %963 = vmatprep.subr.mxu0 %v888
    %964 = vmatpush1.msra.mxu0 %v887
    %965 = vmatprep.subr.mxu0 %v890
    %966 = vmatpush1.msra.mxu0 %v889
    %967 = vmatprep.subr.mxu0 %v892
    %968 = vmatpush1.msra.mxu0 %v891
    %969 = vmatprep.subr.mxu0 %v894
    %970 = vmatpush1.msra.mxu0 %v893
    %971 = vmatprep.subr.mxu0 %v896
    %972 = vmatpush1.msra.mxu0 %v895
    %973 = vmatprep.subr.mxu0 %v898
    %974 = vmatpush1.msra.mxu0 %v897
    %975 = vmatprep.subr.mxu0 %v900
    %976 = vmatpush1.msra.mxu0 %v899
    %977 = vmatprep.subr.mxu0 %v902
    %978 = vmatpush1.msra.mxu0 %v901
    %979 = vmatprep.subr.mxu0 %v904
    %980 = vmatpush1.msra.mxu0 %v903
    %981 = vmatprep.subr.mxu0 %v906
    %982 = vmatpush1.msra.mxu0 %v905
    %983 = vmatprep.subr.mxu0 %v908
    %984 = vmatpush1.msra.mxu0 %v907
    %985 = vmatprep.subr.mxu0 %v910
    %986 = vmatpush1.msra.mxu0 %v909
    %987 = vmatprep.subr.mxu0 %v912
    %988 = vmatpush1.msra.mxu0 %v911
    %989 = vmatprep.subr.mxu0 %v914
    %990 = vmatpush1.msra.mxu0 %v913
    %991 = vmatprep.subr.mxu0 %v916
    %992 = vmatpush1.msra.mxu0 %v915
    %993 = vmatprep.subr.mxu0 %v918
    %994 = vmatpush1.msra.mxu0 %v917
    %995 = vmatprep.mubr.f32.mxu0 %v854
    %996 = vmatmul.mubr.f32.gmra.mrb[0].mxu0 %v853
    %v997 = vpop.f32.mrb[0].mxu0
    %v998 = vadd.f32 %v924, %v997
    %v999 = vpop.f32.mrb[0].mxu0
    %v1000 = vadd.f32 %v928, %v999
    %1001 = vdwg.mxu0
    %v1004 = vcombine.low %v998, %v1000
    %v1006 = vunpack.c.l.s4 1983009808
    %v1007 = vunpack.c.0.s8 %v1006
    %v1008 = vlaneseq
    %v1009 = vshrl.u32 %v1008, 7
    %v1010 = vsub.s32 %v1007, %v1009
    %v1011 = vrot.slane %v1004, %v1010
    %1013 = vst [vmem:[%s12] sm:$0xf] %v1011
    // Predicated region
    $region62: #{ae_forward.1} parent=1 // pred_check
      _
    $region63: #{ae_forward.1} parent=1 // pred_check_branch
      %1015 = sbr.rel (0) target = $region65
    $region64: #{ae_forward.1} parent=1 // pred_region
      _
    $region65: #{ae_forward.1} parent=1 // pred_fallthru
      _
    // Predicated region
    $region66: #{ae_forward.1} parent=1 // pred_check
      _
    $region67: #{ae_forward.1} parent=1 // pred_check_branch
      %1017 = sbr.rel (0) target = $region69
    $region68: #{ae_forward.1} parent=1 // pred_region
      _
    $region69: #{ae_forward.1} parent=1 // pred_fallthru
      _
    // Predicated region
    $region70: #{ae_forward.1} parent=1 // pred_check
      _
    $region71: #{ae_forward.1} parent=1 // pred_check_branch
      %1019 = sbr.rel (0) target = $region73
    $region72: #{ae_forward.1} parent=1 // pred_region
      _
    $region73: #{ae_forward.1} parent=1 // pred_fallthru
      _
    // Predicated region
    $region74: #{ae_forward.1} parent=1 // pred_check
      _
    $region75: #{ae_forward.1} parent=1 // pred_check_branch
      %1021 = sbr.rel (0) target = $region77
    $region76: #{ae_forward.1} parent=1 // pred_region
      _
    $region77: #{ae_forward.1} parent=1 // pred_fallthru
      _
    %1022 = vsyncpa [#allocation3], 1
    %1023 = vsyncpa [#allocation5], 1

</llo_original>
